<compile_context>
chip_gen: v7x
topology: tpu7x:2x2x1
jax: 0.10.0
libtpu: 0.0.40
codegen_flags: <defaults>
</compile_context>

<pallas_src>
import jax
import jax.numpy as jnp
from jax.experimental import pallas as pl
from jax.experimental.pallas import tpu as pltpu


def _round_up(n, m):
    return ((n + m - 1) // m) * m


def _cat_linear_tanh_relu_kernel(x_ref, w_ref, b_ref, o_ref):
    # x_ref: (tb, F_in) f32, w_ref: (F_in, F_out) f32, b_ref: (1, F_out) f32
    # o_ref: (tb, F_in + F_out) = relu(tanh(cat([x, x @ W + b], axis=1)))
    x = x_ref[...]
    w = w_ref[...]
    f_in = x.shape[1]

    # K=3 contraction on the VPU: broadcast-FMA per input feature.
    y = b_ref[...]                       # (1, F_out) broadcasts over rows
    for k in range(f_in):                # static unroll (F_in = 3)
        y = y + x[:, k:k + 1] * w[k:k + 1, :]

    z = jnp.concatenate([x, y], axis=1)  # lane-axis concat, in registers
    o_ref[...] = jnp.maximum(jnp.tanh(z), 0.0).astype(o_ref.dtype)


def cat_linear_tanh_relu(x, w, b, *, batch_tile=4096, small_batch_threshold=16):
    """x: (B, F_in) f32; w: (F_in, F_out) f32; b: (F_out,) f32
    -> relu(tanh(cat([x, x @ w + b], axis=1))) : (B, F_in + F_out) f32."""
    B, f_in = x.shape
    f_out = w.shape[1]

    # Tiny batches: kernel launch + pipeline overhead exceeds the work.
    if B <= small_batch_threshold:
        return jnp.maximum(
            jnp.tanh(jnp.concatenate([x, x @ w + b], axis=1)), 0.0)

    b2 = b.reshape(1, f_out)

    # Batch tile: large (amortize per-step overhead), multiple of 8 (sublane),
    # and forced to give >= 2 grid steps so the 'parallel' axis can shard
    # across both TensorCores on v7x.
    tb = _round_up(min(batch_tile, B), 8)
    if pl.cdiv(B, tb) < 2:
        tb = _round_up(pl.cdiv(B, 2), 8)
    grid = (pl.cdiv(B, tb),)  # ragged tail: OOB reads padded, OOB writes dropped

    vmem = pltpu.MemorySpace.VMEM
    return pl.pallas_call(
        _cat_linear_tanh_relu_kernel,
        out_shape=jax.ShapeDtypeStruct((B, f_in + f_out), jnp.float32),
        grid=grid,
        in_specs=[
            pl.BlockSpec((tb, f_in), lambda i: (i, 0), memory_space=vmem),
            pl.BlockSpec((f_in, f_out), lambda i: (0, 0), memory_space=vmem),
            pl.BlockSpec((1, f_out), lambda i: (0, 0), memory_space=vmem),
        ],
        out_specs=pl.BlockSpec((tb, f_in + f_out), lambda i: (i, 0),
                               memory_space=vmem),
        compiler_params=pltpu.CompilerParams(
            dimension_semantics=("parallel",),
        ),
    )(x, w, b2)


if __name__ == "__main__":
    key = jax.random.PRNGKey(0)
    k_x, k_w, k_b = jax.random.split(key, 3)

    # Small demo batch; non-multiple-of-tile so the ragged-tail path and the
    # 2-step grid (dual-TC split) are both exercised.
    B, F_IN, F_OUT = 70, 3, 6

    x = jax.random.normal(k_x, (B, F_IN), dtype=jnp.float32)
    # Deterministic Linear(3, 6) parameters (PyTorch-style uniform init bound).
    bound = 1.0 / jnp.sqrt(jnp.float32(F_IN))
    w = jax.random.uniform(k_w, (F_IN, F_OUT), dtype=jnp.float32,
                           minval=-bound, maxval=bound)
    b = jax.random.uniform(k_b, (F_OUT,), dtype=jnp.float32,
                           minval=-bound, maxval=bound)

    out = jax.block_until_ready(cat_linear_tanh_relu(x, w, b))

    # Pure-JAX reference check.
    ref = jnp.maximum(
        jnp.tanh(jnp.concatenate([x, x @ w + b], axis=1)), 0.0)
    assert out.shape == (B, F_IN + F_OUT)
    assert jnp.allclose(out, ref, atol=1e-5, rtol=1e-5)

    print("KERNEL_OK")
</pallas_src>

<mosaic_0001>
module attributes {stable_mosaic.version = 11 : i64} {
  func.func @_cat_linear_tanh_relu_kernel(%arg0: i32, %arg1: memref<40x3xf32, #tpu.memory_space<vmem>>, %arg2: memref<3x6xf32, #tpu.memory_space<vmem>>, %arg3: memref<1x6xf32, #tpu.memory_space<vmem>>, %arg4: memref<40x9xf32, #tpu.memory_space<vmem>>) attributes {dimension_semantics = [#tpu.dimension_semantics<parallel>], iteration_bounds = array<i64: 2>, scalar_prefetch = 0 : i64, scratch_operands = 0 : i64, tpu.core_type = #tpu.core_type<tc>, window_params = [{transform_indices = @transform_0, window_bounds = array<i64: 40, 3>}, {pipeline_mode = #tpu.pipeline_mode<synchronous>, transform_indices = @transform_1, window_bounds = array<i64: 3, 6>}, {pipeline_mode = #tpu.pipeline_mode<synchronous>, transform_indices = @transform_2, window_bounds = array<i64: 1, 6>}, {transform_indices = @transform_3, window_bounds = array<i64: 40, 9>}]} {
    %c0 = arith.constant 0 : index
    %c0_0 = arith.constant 0 : index
    %0 = vector.load %arg1[%c0, %c0_0] : memref<40x3xf32, #tpu.memory_space<vmem>>, vector<40x3xf32>
    %c0_1 = arith.constant 0 : index
    %c0_2 = arith.constant 0 : index
    %1 = vector.load %arg2[%c0_1, %c0_2] : memref<3x6xf32, #tpu.memory_space<vmem>>, vector<3x6xf32>
    %c0_3 = arith.constant 0 : index
    %c0_4 = arith.constant 0 : index
    %2 = vector.load %arg3[%c0_3, %c0_4] : memref<1x6xf32, #tpu.memory_space<vmem>>, vector<1x6xf32>
    %3 = vector.extract_strided_slice %0 {offsets = [0, 0], sizes = [40, 1], strides = [1, 1]} : vector<40x3xf32> to vector<40x1xf32>
    %4 = vector.extract_strided_slice %1 {offsets = [0, 0], sizes = [1, 6], strides = [1, 1]} : vector<3x6xf32> to vector<1x6xf32>
    %5 = vector.broadcast %3 : vector<40x1xf32> to vector<40x6xf32>
    %6 = vector.broadcast %4 : vector<1x6xf32> to vector<40x6xf32>
    %7 = arith.mulf %5, %6 : vector<40x6xf32>
    %8 = vector.broadcast %2 : vector<1x6xf32> to vector<40x6xf32>
    %9 = arith.addf %8, %7 : vector<40x6xf32>
    %10 = vector.extract_strided_slice %0 {offsets = [0, 1], sizes = [40, 1], strides = [1, 1]} : vector<40x3xf32> to vector<40x1xf32>
    %11 = vector.extract_strided_slice %1 {offsets = [1, 0], sizes = [1, 6], strides = [1, 1]} : vector<3x6xf32> to vector<1x6xf32>
    %12 = vector.broadcast %10 : vector<40x1xf32> to vector<40x6xf32>
    %13 = vector.broadcast %11 : vector<1x6xf32> to vector<40x6xf32>
    %14 = arith.mulf %12, %13 : vector<40x6xf32>
    %15 = arith.addf %9, %14 : vector<40x6xf32>
    %16 = vector.extract_strided_slice %0 {offsets = [0, 2], sizes = [40, 1], strides = [1, 1]} : vector<40x3xf32> to vector<40x1xf32>
    %17 = vector.extract_strided_slice %1 {offsets = [2, 0], sizes = [1, 6], strides = [1, 1]} : vector<3x6xf32> to vector<1x6xf32>
    %18 = vector.broadcast %16 : vector<40x1xf32> to vector<40x6xf32>
    %19 = vector.broadcast %17 : vector<1x6xf32> to vector<40x6xf32>
    %20 = arith.mulf %18, %19 : vector<40x6xf32>
    %21 = arith.addf %15, %20 : vector<40x6xf32>
    %22 = tpu.concatenate %0, %21 in 1 : vector<40x3xf32>, vector<40x6xf32> -> vector<40x9xf32>
    %23 = math.tanh %22 : vector<40x9xf32>
    %cst = arith.constant 0.000000e+00 : f32
    %24 = vector.broadcast %cst : f32 to vector<40x9xf32>
    %25 = arith.maximumf %23, %24 : vector<40x9xf32>
    %c0_5 = arith.constant 0 : index
    %c0_6 = arith.constant 0 : index
    %26 = vector.load %arg4[%c0_5, %c0_6] : memref<40x9xf32, #tpu.memory_space<vmem>>, vector<40x9xf32>
    tpu.vector_store %arg4[%c0_5, %c0_6], %25 {strides = array<i32>} : memref<40x9xf32, #tpu.memory_space<vmem>>, vector<40x9xf32>,
    return
  }
  func.func @transform_0(%arg0: i32) -> (i32, i32) {
    %c0_i32 = arith.constant 0 : i32
    %c0_i32_0 = arith.constant 0 : i32
    return %arg0, %c0_i32 : i32, i32
  }
  func.func @transform_1(%arg0: i32) -> (i32, i32) {
    %c0_i32 = arith.constant 0 : i32
    %c0_i32_0 = arith.constant 0 : i32
    %c0_i32_1 = arith.constant 0 : i32
    return %c0_i32, %c0_i32_0 : i32, i32
  }
  func.func @transform_2(%arg0: i32) -> (i32, i32) {
    %c0_i32 = arith.constant 0 : i32
    %c0_i32_0 = arith.constant 0 : i32
    %c0_i32_1 = arith.constant 0 : i32
    return %c0_i32, %c0_i32_0 : i32, i32
  }
  func.func @transform_3(%arg0: i32) -> (i32, i32) {
    %c0_i32 = arith.constant 0 : i32
    %c0_i32_0 = arith.constant 0 : i32
    return %arg0, %c0_i32 : i32, i32
  }
}

</mosaic_0001>

<llo_original>
// kernel: tpu_custom_call.1
$region0: #{tpu_custom_call.1}
  #allocation0 [shape = 'u32[]', space=smem, size = 0x4, offset = 0x4, fixed_abs, tag = 'smem constant byte address 0x4 - core index']
  #allocation1 [shape = 'u32[144,128]{1,0:T(1,128)}', space=vmem, size = 0x12000, scoped, tag = 'internal scratch']
  %s0 = inlined_call_operand.vmem [shape: f32[70,3], index: 0, kind: input, shape index: {}]
  %s1 = inlined_call_operand.vmem [shape: f32[3,6], index: 1, kind: input, shape index: {}]
  %s2 = inlined_call_operand.vmem [shape: f32[1,6], index: 2, kind: input, shape index: {}]
  %s3 = inlined_call_operand.vmem [shape: f32[70,9], index: 3, kind: output, shape index: {}]
  %s4 = sld [smem:[#allocation0]]
  $region93: #{tpu_custom_call.1} parent=0
    _
  %s6 = ssub.s32 1, %s4
  %s7 = scalar_select 0, %s6, %s4
  $region1: #{tpu_custom_call.1} parent=0
    #allocation2 [shape = 'u8[40960]{0}', space=vmem, size = 0xa000, scoped, tag = 'output window, operand 0']
    loop: start=0, step=1, limit=4
    $region2: #{tpu_custom_call.1} parent=1 // loop_pre_header
      _
    $region3: #{tpu_custom_call.1} parent=1 // loop_header
      %s9 = sphi 0, %s13
      %p10 = scmp.ge.s32.totalorder %s9, 4
      %s19 = sphi 0, %s21
      %s22 = sphi 0, %s19
      %s23 = sphi 0, %s22
      %s39 = sphi 0, %s23
      %s43 = sphi 0, %s43
      %s45 = sphi 0, %s43
      %s46 = sphi 0, %s45
      %s60 = sphi 0, %s46
      %s64 = sphi 0, %s64
      %s66 = sphi 0, %s64
      %s67 = sphi 0, %s66
      %s81 = sphi 0, %s67
      %s87 = sphi 0, %s89
      %s90 = sphi 0, %s87
      %s91 = sphi 0, %s90
      %s107 = sphi 0, %s91
    $region4: #{tpu_custom_call.1} parent=1 // loop_header_branch
      %12 = sbr.rel (%p10) target = $region8
    $region5: #{tpu_custom_call.1} parent=1 // loop_body
      %s14 = ssub.s32 %s9, 1
      %s15 = ssub.s32 %s9, 2
      %s16 = sadd.s32 %s9, 1
      %s17 = ssub.s32 %s9, %s16
      %p18 = scmp.eq.s32.totalorder %s17, 0
      %s20 = sadd.s32 %s19, 1
      %s21 = scalar_select %p18, %s19, %s20
      %p24 = pneg %p18
      %p25 = scmp.eq.s32.totalorder %s9, 1
      %p26 = por %p24, %p25
      %p27 = scmp.ne.s32.totalorder %s19, %s22
      %p28 = scmp.eq.s32.totalorder %s9, 0
      %p29 = por %p27, %p28
      %p30 = scmp.ne.s32.totalorder %s19, %s22
      %p31 = scmp.eq.s32.totalorder %s14, 1
      %p32 = por %p30, %p31
      %p33 = scmp.ne.s32.totalorder %s22, %s23
      %p34 = scmp.eq.s32.totalorder %s14, 0
      %p35 = por %p33, %p34
      %p36 = scmp.ne.s32.totalorder %s22, %s23
      %p37 = scmp.eq.s32.totalorder %s15, 1
      %p38 = por %p36, %p37
      %p40 = scmp.ne.s32.totalorder %s23, %s39
      %p41 = scmp.eq.s32.totalorder %s15, 0
      %p42 = por %p40, %p41
      %s44 = sadd.s32 %s43, 1
      %p47 = scmp.eq.s32.totalorder %s9, 1
      %p48 = scmp.ne.s32.totalorder %s43, %s45
      %p49 = scmp.eq.s32.totalorder %s9, 0
      %p50 = por %p48, %p49
      %p51 = scmp.ne.s32.totalorder %s43, %s45
      %p52 = scmp.eq.s32.totalorder %s14, 1
      %p53 = por %p51, %p52
      %p54 = scmp.ne.s32.totalorder %s45, %s46
      %p55 = scmp.eq.s32.totalorder %s14, 0
      %p56 = por %p54, %p55
      %p57 = scmp.ne.s32.totalorder %s45, %s46
      %p58 = scmp.eq.s32.totalorder %s15, 1
      %p59 = por %p57, %p58
      %p61 = scmp.ne.s32.totalorder %s46, %s60
      %p62 = scmp.eq.s32.totalorder %s15, 0
      %p63 = por %p61, %p62
      %s65 = sadd.s32 %s64, 1
      %p68 = scmp.eq.s32.totalorder %s9, 1
      %p69 = scmp.ne.s32.totalorder %s64, %s66
      %p70 = scmp.eq.s32.totalorder %s9, 0
      %p71 = por %p69, %p70
      %p72 = scmp.ne.s32.totalorder %s64, %s66
      %p73 = scmp.eq.s32.totalorder %s14, 1
      %p74 = por %p72, %p73
      %p75 = scmp.ne.s32.totalorder %s66, %s67
      %p76 = scmp.eq.s32.totalorder %s14, 0
      %p77 = por %p75, %p76
      %p78 = scmp.ne.s32.totalorder %s66, %s67
      %p79 = scmp.eq.s32.totalorder %s15, 1
      %p80 = por %p78, %p79
      %p82 = scmp.ne.s32.totalorder %s67, %s81
      %p83 = scmp.eq.s32.totalorder %s15, 0
      %p84 = por %p82, %p83
      %s85 = ssub.s32 %s9, %s16
      %p86 = scmp.eq.s32.totalorder %s85, 0
      %s88 = sadd.s32 %s87, 1
      %s89 = scalar_select %p86, %s87, %s88
      %p92 = pneg %p86
      %p93 = scmp.eq.s32.totalorder %s9, 1
      %p94 = por %p92, %p93
      %p95 = scmp.ne.s32.totalorder %s87, %s90
      %p96 = scmp.eq.s32.totalorder %s9, 0
      %p97 = por %p95, %p96
      %p98 = scmp.ne.s32.totalorder %s87, %s90
      %p99 = scmp.eq.s32.totalorder %s14, 1
      %p100 = por %p98, %p99
      %p101 = scmp.ne.s32.totalorder %s90, %s91
      %p102 = scmp.eq.s32.totalorder %s14, 0
      %p103 = por %p101, %p102
      %p104 = scmp.ne.s32.totalorder %s90, %s91
      %p105 = scmp.eq.s32.totalorder %s15, 1
      %p106 = por %p104, %p105
      %p108 = scmp.ne.s32.totalorder %s91, %s107
      %p109 = scmp.eq.s32.totalorder %s15, 0
      %p110 = por %p108, %p109
      %p111 = scmp.le.s32.totalorder 1, %s9
      %p112 = scmp.lt.s32.totalorder %s9, 3
      %p113 = pnand %p111, %p112
      %p114 = pneg %p113
      // Predicated region
      $region9: #{tpu_custom_call.1} parent=5 // pred_check
        _
      $region10: #{tpu_custom_call.1} parent=5 // pred_check_branch
        %116 = sbr.rel (%p113) target = $region12
      $region11: #{tpu_custom_call.1} parent=5 // pred_region
        %s117 = ssub.s32 %s9, 1
        // Predicated region
        $region13: #{tpu_custom_call.1} parent=11 // pred_check
          %p118 = pneg %p56
        $region14: #{tpu_custom_call.1} parent=11 // pred_check_branch
          %120 = sbr.rel (%p118) target = $region16
        $region15: #{tpu_custom_call.1} parent=11 // pred_region
          _
        $region16: #{tpu_custom_call.1} parent=11 // pred_fallthru
          _
        // Predicated region
        $region17: #{tpu_custom_call.1} parent=11 // pred_check
          %p121 = pneg %p77
        $region18: #{tpu_custom_call.1} parent=11 // pred_check_branch
          %123 = sbr.rel (%p121) target = $region20
        $region19: #{tpu_custom_call.1} parent=11 // pred_region
          _
        $region20: #{tpu_custom_call.1} parent=11 // pred_fallthru
          _
      $region12: #{tpu_custom_call.1} parent=5 // pred_fallthru
        _
      %p124 = scmp.lt.s32.totalorder %s9, 2
      // Predicated region
      $region21: #{tpu_custom_call.1} parent=5 // pred_check
        %p125 = pneg %p124
      $region22: #{tpu_custom_call.1} parent=5 // pred_check_branch
        %127 = sbr.rel (%p125) target = $region24
      $region23: #{tpu_custom_call.1} parent=5 // pred_region
        // Predicated region
        $region25: #{tpu_custom_call.1} parent=23 // pred_check
          %p128 = pneg %p29
        $region26: #{tpu_custom_call.1} parent=23 // pred_check_branch
          %130 = sbr.rel (%p128) target = $region28
        $region27: #{tpu_custom_call.1} parent=23 // pred_region
          %s131 = smul.u32 5, %s9
          %s132 = ssub.s32 9, %s131
          %p133 = scmp.lt.s32.totalorder %s132, 5
          %s134 = scalar_select %p133, %s132, 5
          %s135 = smul.u32 128, %s134
          %p136 = scmp.lt.s32.totalorder %s131, 8
          %s137 = scalar_select %p136, %s131, 8
          %s138 = smul.addr %s137, 8
          %s139 = scalar_lea.vmem %s0, %s138
          %s140 = smul.u32 5, %s9
          %s141 = ssub.s32 9, %s140
          %p142 = scmp.lt.s32.totalorder %s141, 5
          %s143 = scalar_select %p142, %s141, 5
          %s144 = smul.u32 128, %s143
        $region28: #{tpu_custom_call.1} parent=23 // pred_fallthru
          _
      $region24: #{tpu_custom_call.1} parent=5 // pred_fallthru
        _
      %p145 = scmp.le.s32.totalorder 1, %s9
      %p146 = scmp.lt.s32.totalorder %s9, 3
      %p147 = pnand %p145, %p146
      %p148 = pneg %p147
      // Predicated region
      $region29: #{tpu_custom_call.1} parent=5 // pred_check
        _
      $region30: #{tpu_custom_call.1} parent=5 // pred_check_branch
        %150 = sbr.rel (%p147) target = $region32
      $region31: #{tpu_custom_call.1} parent=5 // pred_region
        %s151 = ssub.s32 %s9, 1
        %s152 = smul.u32 5, %s14
        %s153 = ssub.s32 9, %s152
        %p154 = scmp.lt.s32.totalorder %s153, 5
        %s155 = scalar_select %p154, %s153, 5
        %s156 = smul.u32 128, %s155
        %p157 = scmp.lt.s32.totalorder %s152, 8
        %s158 = scalar_select %p157, %s152, 8
        %s159 = smul.addr %s158, 8
        %s160 = scalar_lea.vmem %s0, %s159
        %p161 = pneg %p35
        %p162 = pneg %p32
        %p163 = pneg %p56
        %p164 = pneg %p53
        %p165 = pneg %p77
        %p166 = pneg %p74
        %p167 = pneg %p103
        %p168 = pneg %p100
        %s169 = sand.u32 %s90, 1
        %s170 = sand.u32 %s90, 1
        %s171 = smul.addr %s170, 40
        %s172 = scalar_lea.vmem [#allocation2], %s171
        %s173 = smul.u32 5, %s14
        %s174 = ssub.s32 9, %s173
        %p175 = scmp.lt.s32.totalorder %s174, 5
        %s176 = scalar_select %p175, %s174, 5
        %s177 = smul.u32 128, %s176
        %p178 = scmp.lt.s32.totalorder %s173, 8
        %s179 = scalar_select %p178, %s173, 8
        %s180 = smul.addr %s179, 8
        %s181 = scalar_lea.vmem %s0, %s180
        %s182 = smul.u32 5, %s14
        %s183 = ssub.s32 9, %s182
        %p184 = scmp.lt.s32.totalorder %s183, 5
        %s185 = scalar_select %p184, %s183, 5
        %s186 = smul.u32 128, %s185
        %s187 = smul.u32 5, %s14
        %s188 = ssub.s32 9, %s187
        %p189 = scmp.lt.s32.totalorder %s188, 5
        %s190 = scalar_select %p189, %s188, 5
        %s191 = smul.u32 128, %s190
        %v192 = vld [vmem:[%s181] sm:$0xff]
        %v193 = vld [vmem:[%s181 + $0x8] sm:$0xff]
        %v194 = vld [vmem:[%s181 + $0x10] sm:$0xff]
        %v195 = vld [vmem:[%s181 + $0x18] sm:$0xff]
        %v196 = vld [vmem:[%s181 + $0x20] sm:$0xff]
        %v197 = vld [vmem:[%s1] sm:$0x7]
        %v198 = vld [vmem:[%s2] sm:$0x1]
        %200 = vset.pattern.permute.xlu0 0
        %201 = vperm.xlu0 %200, %v192
        %v202 = vpop.permute.xlu0 %201
        %205 = vset.pattern.permute.xlu0 0
        %206 = vperm.xlu0 %205, %v193
        %v207 = vpop.permute.xlu0 %206
        %210 = vset.pattern.permute.xlu0 0
        %211 = vperm.xlu0 %210, %v194
        %v212 = vpop.permute.xlu0 %211
        %215 = vset.pattern.permute.xlu0 0
        %216 = vperm.xlu0 %215, %v195
        %v217 = vpop.permute.xlu0 %216
        %220 = vset.pattern.permute.xlu0 0
        %221 = vperm.xlu0 %220, %v196
        %v222 = vpop.permute.xlu0 %221
        %v224 = vlaneseq
        %v225 = vshrl.u32 %v224, 7
        %v226 = vsub.s32 0, %v225
        %v227 = vrot.slane %v197, %v226
        %v228 = vmul.f32 %v202, %v227
        %v229 = vmul.f32 %v207, %v227
        %v230 = vmul.f32 %v212, %v227
        %v231 = vmul.f32 %v217, %v227
        %v232 = vmul.f32 %v222, %v227
        %v234 = vlaneseq
        %v235 = vshrl.u32 %v234, 7
        %v236 = vsub.s32 0, %v235
        %v237 = vrot.slane %v198, %v236
        %v239 = vadd.f32 %v237, %v228
        %v240 = vadd.f32 %v237, %v229
        %v241 = vadd.f32 %v237, %v230
        %v242 = vadd.f32 %v237, %v231
        %v243 = vadd.f32 %v237, %v232
        %244 = vset.pattern.permute.xlu0 1
        %245 = vperm.xlu0 %244, %v192
        %v246 = vpop.permute.xlu0 %245
        %248 = vset.pattern.permute.xlu0 1
        %249 = vperm.xlu0 %248, %v193
        %v250 = vpop.permute.xlu0 %249
        %252 = vset.pattern.permute.xlu0 1
        %253 = vperm.xlu0 %252, %v194
        %v254 = vpop.permute.xlu0 %253
        %256 = vset.pattern.permute.xlu0 1
        %257 = vperm.xlu0 %256, %v195
        %v258 = vpop.permute.xlu0 %257
        %260 = vset.pattern.permute.xlu0 1
        %261 = vperm.xlu0 %260, %v196
        %v262 = vpop.permute.xlu0 %261
        %v264 = vlaneseq
        %v265 = vshrl.u32 %v264, 7
        %v266 = vsub.s32 1, %v265
        %v267 = vrot.slane %v197, %v266
        %v268 = vmul.f32 %v246, %v267
        %v269 = vmul.f32 %v250, %v267
        %v270 = vmul.f32 %v254, %v267
        %v271 = vmul.f32 %v258, %v267
        %v272 = vmul.f32 %v262, %v267
        %v273 = vadd.f32 %v239, %v268
        %v274 = vadd.f32 %v240, %v269
        %v275 = vadd.f32 %v241, %v270
        %v276 = vadd.f32 %v242, %v271
        %v277 = vadd.f32 %v243, %v272
        %278 = vset.pattern.permute.xlu0 2
        %279 = vperm.xlu0 %278, %v192
        %v280 = vpop.permute.xlu0 %279
        %282 = vset.pattern.permute.xlu0 2
        %283 = vperm.xlu0 %282, %v193
        %v284 = vpop.permute.xlu0 %283
        %286 = vset.pattern.permute.xlu0 2
        %287 = vperm.xlu0 %286, %v194
        %v288 = vpop.permute.xlu0 %287
        %290 = vset.pattern.permute.xlu0 2
        %291 = vperm.xlu0 %290, %v195
        %v292 = vpop.permute.xlu0 %291
        %294 = vset.pattern.permute.xlu0 2
        %295 = vperm.xlu0 %294, %v196
        %v296 = vpop.permute.xlu0 %295
        %v298 = vlaneseq
        %v299 = vshrl.u32 %v298, 7
        %v300 = vsub.s32 2, %v299
        %v301 = vrot.slane %v197, %v300
        %v302 = vmul.f32 %v280, %v301
        %v303 = vmul.f32 %v284, %v301
        %v304 = vmul.f32 %v288, %v301
        %v305 = vmul.f32 %v292, %v301
        %v306 = vmul.f32 %v296, %v301
        %v307 = vadd.f32 %v273, %v302
        %v308 = vadd.f32 %v274, %v303
        %v309 = vadd.f32 %v275, %v304
        %v310 = vadd.f32 %v276, %v305
        %v311 = vadd.f32 %v277, %v306
        %317 = vrot.lane.b32.xlu0 %v307, 3
        %v318 = vpop.permute.xlu0 %317
        %319 = vrot.lane.b32.xlu0 %v308, 3
        %v320 = vpop.permute.xlu0 %319
        %321 = vrot.lane.b32.xlu0 %v309, 3
        %v322 = vpop.permute.xlu0 %321
        %323 = vrot.lane.b32.xlu0 %v310, 3
        %v324 = vpop.permute.xlu0 %323
        %325 = vrot.lane.b32.xlu0 %v311, 3
        %v326 = vpop.permute.xlu0 %325
        %vm332 = vcmask 23552
        %v333 = vsel %vm332, %v192, %v318
        %v334 = vsel %vm332, %v193, %v320
        %v335 = vsel %vm332, %v194, %v322
        %v336 = vsel %vm332, %v195, %v324
        %v337 = vsel %vm332, %v196, %v326
        %v338 = vtanh.pop %v333
        %v339 = vtanh.pop %v334
        %v340 = vtanh.pop %v335
        %v341 = vtanh.pop %v336
        %v342 = vtanh.pop %v337
        %v343 = vmax.f32 %v338, 0.0
        %v344 = vmax.f32 %v339, 0.0
        %v345 = vmax.f32 %v340, 0.0
        %v346 = vmax.f32 %v341, 0.0
        %v347 = vmax.f32 %v342, 0.0
        %vm348 = vcmask 72704
        %349 = vst.msk [vmem:[%s172] sm:$0xff] %vm348, %v343
        %350 = vst.msk [vmem:[%s172 + $0x8] sm:$0xff] %vm348, %v344
        %351 = vst.msk [vmem:[%s172 + $0x10] sm:$0xff] %vm348, %v345
        %352 = vst.msk [vmem:[%s172 + $0x18] sm:$0xff] %vm348, %v346
        %353 = vst.msk [vmem:[%s172 + $0x20] sm:$0xff] %vm348, %v347
        %s354 = sand.u32 %s90, 1
        %s355 = sand.u32 %s90, 1
        %s356 = smul.addr %s355, 40
        %s357 = scalar_lea.vmem [#allocation2], %s356
        // Predicated region
        $region33: #{tpu_custom_call.1} parent=31 // pred_check
          %p358 = pneg %p100
        $region34: #{tpu_custom_call.1} parent=31 // pred_check_branch
          %360 = sbr.rel (%p358) target = $region36
        $region35: #{tpu_custom_call.1} parent=31 // pred_region
          %s361 = smul.u32 5, %s14
          %s362 = ssub.s32 9, %s361
          %p363 = scmp.lt.s32.totalorder %s362, 5
          %s364 = scalar_select %p363, %s362, 5
          %s365 = smul.u32 128, %s364
          %p366 = scmp.ne.s32.totalorder 0, %s365
          %s367 = smul.addr %s361, 8
          %s368 = scalar_lea.vmem %s3, %s367
          // Predicated region
          $region37: #{tpu_custom_call.1} parent=35 // pred_check
            %p369 = pneg %p366
          $region38: #{tpu_custom_call.1} parent=35 // pred_check_branch
            %371 = sbr.rel (%p369) target = $region40
          $region39: #{tpu_custom_call.1} parent=35 // pred_region
            // Predicated region
            $region41: #{tpu_custom_call.1} parent=39 // pred_check
              _
            $region42: #{tpu_custom_call.1} parent=39 // pred_check_branch
              %373 = sbr.rel (0) target = $region44
            $region43: #{tpu_custom_call.1} parent=39 // pred_region
              // Predicated region
              $region63: #{tpu_custom_call.1} parent=43 // pred_check
                _
              $region64: #{tpu_custom_call.1} parent=43 // pred_check_branch
                %431 = sbr.rel (0) target = $region66
              $region65: #{tpu_custom_call.1} parent=43 // pred_region
                %s432 = sdiv.u32.pop %s364, 5
                %s433 = srem.u32.pop %s364, 5
                // While loop
                $region67: #{tpu_custom_call.1} parent=65 // loop_pre_header
                  _
                $region68: #{tpu_custom_call.1} parent=65 // loop_header
                  %s435 = sphi 0, %s437
                  %p436 = scmp.ge.s32.totalorder %s435, %s432
                  %s440 = sphi 0, %s455
                  %s441 = sphi %s357, %s458
                  %s442 = sphi %s368, %s459
                $region69: #{tpu_custom_call.1} parent=65 // loop_header_branch
                  %439 = sbr.rel (%p436) target = $region73
                $region70: #{tpu_custom_call.1} parent=65 // loop_body
                  %v443 = vld [vmem:[%s441] sm:$0xff]
                  %444 = vst [vmem:[%s442] sm:$0xff] %v443
                  %v445 = vld [vmem:[%s441 + $0x8] sm:$0xff]
                  %446 = vst [vmem:[%s442 + $0x8] sm:$0xff] %v445
                  %v447 = vld [vmem:[%s441 + $0x10] sm:$0xff]
                  %448 = vst [vmem:[%s442 + $0x10] sm:$0xff] %v447
                  %v449 = vld [vmem:[%s441 + $0x18] sm:$0xff]
                  %450 = vst [vmem:[%s442 + $0x18] sm:$0xff] %v449
                  %v451 = vld [vmem:[%s441 + $0x20] sm:$0xff]
                  %452 = vst [vmem:[%s442 + $0x20] sm:$0xff] %v451
                  %s453 = sadd.s32 1, %s440
                  %p454 = scmp.ge.s32.totalorder %s453, %s432
                  %s455 = scalar_select %p454, 0, %s453
                  %s456 = smul.u32 %s455, 40
                  %s457 = smul.u32 %s455, 40
                  %s458 = scalar_lea.vmem %s357, %s456 [#allocation2]
                  %s459 = scalar_lea.vmem %s368, %s457
                $region71: #{tpu_custom_call.1} parent=65 // loop_footer
                  %s437 = sadd.s32 %s435, 1
                $region72: #{tpu_custom_call.1} parent=65 // loop_footer_branch
                  %434 = sbr.rel target = $region68
                $region73: #{tpu_custom_call.1} parent=65 // loop_exit
                  _
                %s460 = sdiv.u32.pop %s364, 5
                %s461 = srem.u32.pop %s364, 5
                %s462 = smul.u32 %s460, 5
                %s463 = smul.u32 8, %s462
                %s464 = scalar_lea.vmem %s357, %s463 [#allocation2]
                %s465 = smul.u32 8, %s462
                %s466 = scalar_lea.vmem %s368, %s465
                // While loop
                $region74: #{tpu_custom_call.1} parent=65 // loop_pre_header
                  _
                $region75: #{tpu_custom_call.1} parent=65 // loop_header
                  %s468 = sphi 0, %s470
                  %p469 = scmp.ge.s32.totalorder %s468, %s461
                  %s473 = sphi 0, %s480
                  %s474 = sphi %s464, %s483
                  %s475 = sphi %s466, %s484
                $region76: #{tpu_custom_call.1} parent=65 // loop_header_branch
                  %472 = sbr.rel (%p469) target = $region80
                $region77: #{tpu_custom_call.1} parent=65 // loop_body
                  %v476 = vld [vmem:[%s474] sm:$0xff]
                  %477 = vst [vmem:[%s475] sm:$0xff] %v476
                  %s478 = sadd.s32 1, %s473
                  %p479 = scmp.ge.s32.totalorder %s478, %s461
                  %s480 = scalar_select %p479, 0, %s478
                  %s481 = smul.u32 %s480, 8
                  %s482 = smul.u32 %s480, 8
                  %s483 = scalar_lea.vmem %s464, %s481 [#allocation2]
                  %s484 = scalar_lea.vmem %s466, %s482
                $region78: #{tpu_custom_call.1} parent=65 // loop_footer
                  %s470 = sadd.s32 %s468, 1
                $region79: #{tpu_custom_call.1} parent=65 // loop_footer_branch
                  %467 = sbr.rel target = $region75
                $region80: #{tpu_custom_call.1} parent=65 // loop_exit
                  _
              $region66: #{tpu_custom_call.1} parent=43 // pred_fallthru
                _
              // Predicated region
              $region81: #{tpu_custom_call.1} parent=43 // pred_check
                _
              $region82: #{tpu_custom_call.1} parent=43 // pred_check_branch
                %486 = sbr.rel target = $region84
              $region83: #{tpu_custom_call.1} parent=43 // pred_region
                _
              $region84: #{tpu_custom_call.1} parent=43 // pred_fallthru
                _
            $region44: #{tpu_custom_call.1} parent=39 // pred_fallthru
              _
            // Predicated region
            $region45: #{tpu_custom_call.1} parent=39 // pred_check
              _
            $region46: #{tpu_custom_call.1} parent=39 // pred_check_branch
              %375 = sbr.rel target = $region48
            $region47: #{tpu_custom_call.1} parent=39 // pred_region
              %s377 = sdiv.u32.pop %s364, 5
              %s378 = srem.u32.pop %s364, 5
              // While loop
              $region49: #{tpu_custom_call.1} parent=47 // loop_pre_header
                _
              $region50: #{tpu_custom_call.1} parent=47 // loop_header
                %s380 = sphi 0, %s382
                %p381 = scmp.ge.s32.totalorder %s380, %s377
                %s385 = sphi 0, %s400
                %s386 = sphi %s357, %s403
                %s387 = sphi %s368, %s404
              $region51: #{tpu_custom_call.1} parent=47 // loop_header_branch
                %384 = sbr.rel (%p381) target = $region55
              $region52: #{tpu_custom_call.1} parent=47 // loop_body
                %v388 = vld [vmem:[%s386] sm:$0xff]
                %389 = vst [vmem:[%s387] sm:$0xff] %v388
                %v390 = vld [vmem:[%s386 + $0x8] sm:$0xff]
                %391 = vst [vmem:[%s387 + $0x8] sm:$0xff] %v390
                %v392 = vld [vmem:[%s386 + $0x10] sm:$0xff]
                %393 = vst [vmem:[%s387 + $0x10] sm:$0xff] %v392
                %v394 = vld [vmem:[%s386 + $0x18] sm:$0xff]
                %395 = vst [vmem:[%s387 + $0x18] sm:$0xff] %v394
                %v396 = vld [vmem:[%s386 + $0x20] sm:$0xff]
                %397 = vst [vmem:[%s387 + $0x20] sm:$0xff] %v396
                %s398 = sadd.s32 1, %s385
                %p399 = scmp.ge.s32.totalorder %s398, %s377
                %s400 = scalar_select %p399, 0, %s398
                %s401 = smul.u32 %s400, 40
                %s402 = smul.u32 %s400, 40
                %s403 = scalar_lea.vmem %s357, %s401 [#allocation2]
                %s404 = scalar_lea.vmem %s368, %s402
              $region53: #{tpu_custom_call.1} parent=47 // loop_footer
                %s382 = sadd.s32 %s380, 1
              $region54: #{tpu_custom_call.1} parent=47 // loop_footer_branch
                %379 = sbr.rel target = $region50
              $region55: #{tpu_custom_call.1} parent=47 // loop_exit
                _
              %s405 = sdiv.u32.pop %s364, 5
              %s406 = srem.u32.pop %s364, 5
              %s407 = smul.u32 %s405, 5
              %s408 = smul.u32 8, %s407
              %s409 = scalar_lea.vmem %s357, %s408 [#allocation2]
              %s410 = smul.u32 8, %s407
              %s411 = scalar_lea.vmem %s368, %s410
              // While loop
              $region56: #{tpu_custom_call.1} parent=47 // loop_pre_header
                _
              $region57: #{tpu_custom_call.1} parent=47 // loop_header
                %s413 = sphi 0, %s415
                %p414 = scmp.ge.s32.totalorder %s413, %s406
                %s418 = sphi 0, %s425
                %s419 = sphi %s409, %s428
                %s420 = sphi %s411, %s429
              $region58: #{tpu_custom_call.1} parent=47 // loop_header_branch
                %417 = sbr.rel (%p414) target = $region62
              $region59: #{tpu_custom_call.1} parent=47 // loop_body
                %v421 = vld [vmem:[%s419] sm:$0xff]
                %422 = vst [vmem:[%s420] sm:$0xff] %v421
                %s423 = sadd.s32 1, %s418
                %p424 = scmp.ge.s32.totalorder %s423, %s406
                %s425 = scalar_select %p424, 0, %s423
                %s426 = smul.u32 %s425, 8
                %s427 = smul.u32 %s425, 8
                %s428 = scalar_lea.vmem %s409, %s426 [#allocation2]
                %s429 = scalar_lea.vmem %s411, %s427
              $region60: #{tpu_custom_call.1} parent=47 // loop_footer
                %s415 = sadd.s32 %s413, 1
              $region61: #{tpu_custom_call.1} parent=47 // loop_footer_branch
                %412 = sbr.rel target = $region57
              $region62: #{tpu_custom_call.1} parent=47 // loop_exit
                _
            $region48: #{tpu_custom_call.1} parent=39 // pred_fallthru
              _
          $region40: #{tpu_custom_call.1} parent=35 // pred_fallthru
            _
          %487 = vnop
        $region36: #{tpu_custom_call.1} parent=31 // pred_fallthru
          _
      $region32: #{tpu_custom_call.1} parent=5 // pred_fallthru
        _
      %p488 = scmp.le.s32.totalorder 2, %s9
      // Predicated region
      $region85: #{tpu_custom_call.1} parent=5 // pred_check
        %p489 = pneg %p488
      $region86: #{tpu_custom_call.1} parent=5 // pred_check_branch
        %491 = sbr.rel (%p489) target = $region88
      $region87: #{tpu_custom_call.1} parent=5 // pred_region
        %s492 = ssub.s32 %s9, 2
        // Predicated region
        $region89: #{tpu_custom_call.1} parent=87 // pred_check
          %p493 = pneg %p106
        $region90: #{tpu_custom_call.1} parent=87 // pred_check_branch
          %495 = sbr.rel (%p493) target = $region92
        $region91: #{tpu_custom_call.1} parent=87 // pred_region
          %s496 = sand.u32 %s91, 1
          %s497 = sand.u32 %s91, 1
          %s498 = smul.addr %s497, 40
          %s499 = scalar_lea.vmem [#allocation2], %s498
        $region92: #{tpu_custom_call.1} parent=87 // pred_fallthru
          _
      $region88: #{tpu_custom_call.1} parent=5 // pred_fallthru
        _
    $region6: #{tpu_custom_call.1} parent=1 // loop_footer
      %s13 = sadd.s32 1, %s9
    $region7: #{tpu_custom_call.1} parent=1 // loop_footer_branch
      %8 = sbr.rel target = $region3
    $region8: #{tpu_custom_call.1} parent=1 // loop_exit
      _

</llo_original>
